<compile_context>
chip_gen: v5e
topology: v5e:2x2
jax: 0.10.0
libtpu: 0.0.40
codegen_flags: <defaults>
</compile_context>

<pallas_src>
import jax
import jax.numpy as jnp
from jax.experimental import pallas as pl
from jax.experimental.pallas import tpu as pltpu

LANE = 128
SUBLANE = 8


def _round_up(x, m):
    return ((x + m - 1) // m) * m


def mlp_kernel(x_ref, w1_ref, w2_ref, w3_ref, w4_ref, b_ref, o_ref):
    # x_ref: (TM, Kp) bf16 | w*: bf16, lane-padded | b_ref: (4, NP) f32
    # o_ref: (TM, NP) f32 (lane-dense; wrapper slices the real out_dim)
    b = b_ref[...]

    h1 = jnp.dot(x_ref[...], w1_ref[...], preferred_element_type=jnp.float32)
    h1 = jnp.maximum(h1 + b[0:1, :], 0.0)

    h2 = jnp.dot(h1.astype(jnp.bfloat16), w2_ref[...],
                 preferred_element_type=jnp.float32)
    h2 = jnp.maximum(h2 + b[1:2, :], 0.0)

    h3 = jnp.dot(h2.astype(jnp.bfloat16), w3_ref[...],
                 preferred_element_type=jnp.float32)
    h3 = jnp.maximum(h3 + b[2:3, :], 0.0)

    h4 = jnp.dot(h3.astype(jnp.bfloat16), w4_ref[...],
                 preferred_element_type=jnp.float32)
    h4 = h4 + b[3:4, :]

    # sigmoid: exp on EUP, approx reciprocal also on EUP (frees VALU slots)
    o_ref[...] = (pl.reciprocal(1.0 + jnp.exp(-h4), approx=True)
                  ).astype(o_ref.dtype)


def baseline_forward(features, params):
    """features: (B, C, H, W) f32. params: dict of (in,out) weights + (1,out) biases."""
    B = features.shape[0]
    x = features.reshape(B, -1)              # flatten start_dim=1..3 (row-major, like torch)
    K = x.shape[1]
    out_dim = params["w4"].shape[1]

    # Padded sizes: K to a lane multiple, all layer widths to a common lane multiple.
    Kp = _round_up(K, LANE)
    NP = _round_up(max(params["w1"].shape[1], params["w2"].shape[1],
                       params["w3"].shape[1], out_dim), LANE)

    # Row tiling: small batches round up to a sublane multiple; large batches tile at 256.
    tm = 256 if B >= 256 else _round_up(B, SUBLANE)
    Mp = _round_up(B, tm)

    # Prepare operands: bf16 weights / activations, zero padding (harmless through ReLU,
    # padded output lanes are sliced off below).
    xp = jnp.zeros((Mp, Kp), jnp.bfloat16).at[:B, :K].set(x.astype(jnp.bfloat16))

    def pad_w(w, rows, cols):
        return (jnp.zeros((rows, cols), jnp.bfloat16)
                .at[:w.shape[0], :w.shape[1]].set(w.astype(jnp.bfloat16)))

    w1 = pad_w(params["w1"], Kp, NP)
    w2 = pad_w(params["w2"], NP, NP)
    w3 = pad_w(params["w3"], NP, NP)
    w4 = pad_w(params["w4"], NP, NP)

    b_all = jnp.zeros((4, NP), jnp.float32)
    for i, name in enumerate(("b1", "b2", "b3", "b4")):
        bv = params[name].reshape(-1).astype(jnp.float32)
        b_all = b_all.at[i, :bv.shape[0]].set(bv)

    full = lambda shape: pl.BlockSpec(shape, lambda i: (0,) * len(shape))

    out = pl.pallas_call(
        mlp_kernel,
        out_shape=jax.ShapeDtypeStruct((Mp, NP), jnp.float32),
        grid=(Mp // tm,),
        in_specs=[
            pl.BlockSpec((tm, Kp), lambda i: (i, 0)),   # x: tiled over batch rows
            full((Kp, NP)),                             # w1 (resident: block idx constant)
            full((NP, NP)),                             # w2
            full((NP, NP)),                             # w3
            full((NP, NP)),                             # w4
            full((4, NP)),                              # merged biases
        ],
        out_specs=pl.BlockSpec((tm, NP), lambda i: (i, 0)),
        compiler_params=pltpu.CompilerParams(
            dimension_semantics=("parallel",)),
    )(xp, w1, w2, w3, w4, b_all)

    return out[:B, :out_dim]


def init_params(key, input_size, first_out, second_out, third_out, out):
    """nn.Linear-style uniform(+/-1/sqrt(fan_in)) init. Weights stored (in, out)."""
    dims = [(input_size, first_out), (first_out, second_out),
            (second_out, third_out), (third_out, out)]
    params = {}
    for i, (fin, fout) in enumerate(dims, start=1):
        key, kw, kb = jax.random.split(key, 3)
        bound = 1.0 / (fin ** 0.5)
        params[f"w{i}"] = jax.random.uniform(kw, (fin, fout), jnp.float32,
                                             minval=-bound, maxval=bound)
        params[f"b{i}"] = jax.random.uniform(kb, (1, fout), jnp.float32,
                                             minval=-bound, maxval=bound)
    return params


if __name__ == "__main__":
    key = jax.random.PRNGKey(0)
    k_in, k_p = jax.random.split(key)

    # small shapes consistent with the module: batch=2, C=4, H=W=16 -> input_size=1024
    B, C, H, W = 2, 4, 16, 16
    input_size = C * H * W
    first_out, second_out, third_out, out = 128, 64, 32, 8

    features = jax.random.normal(k_in, (B, C, H, W), jnp.float32)
    params = init_params(k_p, input_size, first_out, second_out, third_out, out)

    y = baseline_forward(features, params)
    jax.block_until_ready(y)

    # reference in plain f32 JAX (tolerance loosened for bf16 weights/activations)
    x_flat = features.reshape(B, -1)
    h = x_flat
    for i in range(1, 4):
        h = jnp.maximum(h @ params[f"w{i}"] + params[f"b{i}"], 0.0)
    ref = jax.nn.sigmoid(h @ params["w4"] + params["b4"])
    assert y.shape == (B, out), f"bad output shape {y.shape}"
    assert jnp.allclose(y, ref, atol=3e-2, rtol=3e-2), "mismatch vs reference"

    print("KERNEL_OK")
</pallas_src>

<mosaic_0001>
module attributes {stable_mosaic.version = 11 : i64} {
  func.func @mlp_kernel(%arg0: i32, %arg1: memref<8x1024xbf16, #tpu.memory_space<vmem>>, %arg2: memref<1024x128xbf16, #tpu.memory_space<vmem>>, %arg3: memref<128x128xbf16, #tpu.memory_space<vmem>>, %arg4: memref<128x128xbf16, #tpu.memory_space<vmem>>, %arg5: memref<128x128xbf16, #tpu.memory_space<vmem>>, %arg6: memref<4x128xf32, #tpu.memory_space<vmem>>, %arg7: memref<8x128xf32, #tpu.memory_space<vmem>>) attributes {dimension_semantics = [#tpu.dimension_semantics<parallel>], iteration_bounds = array<i64: 1>, scalar_prefetch = 0 : i64, scratch_operands = 0 : i64, tpu.core_type = #tpu.core_type<tc>, window_params = [{transform_indices = @transform_0, window_bounds = array<i64: 8, 1024>}, {pipeline_mode = #tpu.pipeline_mode<synchronous>, transform_indices = @transform_1, window_bounds = array<i64: 1024, 128>}, {pipeline_mode = #tpu.pipeline_mode<synchronous>, transform_indices = @transform_2, window_bounds = array<i64: 128, 128>}, {pipeline_mode = #tpu.pipeline_mode<synchronous>, transform_indices = @transform_3, window_bounds = array<i64: 128, 128>}, {pipeline_mode = #tpu.pipeline_mode<synchronous>, transform_indices = @transform_4, window_bounds = array<i64: 128, 128>}, {pipeline_mode = #tpu.pipeline_mode<synchronous>, transform_indices = @transform_5, window_bounds = array<i64: 4, 128>}, {transform_indices = @transform_6, window_bounds = array<i64: 8, 128>}]} {
    %c0 = arith.constant 0 : index
    %c0_0 = arith.constant 0 : index
    %0 = vector.load %arg6[%c0, %c0_0] : memref<4x128xf32, #tpu.memory_space<vmem>>, vector<4x128xf32>
    %c0_1 = arith.constant 0 : index
    %c0_2 = arith.constant 0 : index
    %1 = vector.load %arg1[%c0_1, %c0_2] : memref<8x1024xbf16, #tpu.memory_space<vmem>>, vector<8x1024xbf16>
    %c0_3 = arith.constant 0 : index
    %c0_4 = arith.constant 0 : index
    %2 = vector.load %arg2[%c0_3, %c0_4] : memref<1024x128xbf16, #tpu.memory_space<vmem>>, vector<1024x128xbf16>
    %cst = arith.constant dense<0.000000e+00> : vector<8x128xf32>
    %3 = tpu.matmul %1, %2, %cst {dimension_numbers = #tpu.dot_dimension_numbers<[1], [0], [0], [1], [0, 0, 1, 1], [], []>} : vector<8x1024xbf16>, vector<1024x128xbf16>, vector<8x128xf32> -> vector<8x128xf32>
    %4 = vector.extract_strided_slice %0 {offsets = [0, 0], sizes = [1, 128], strides = [1, 1]} : vector<4x128xf32> to vector<1x128xf32>
    %5 = vector.broadcast %4 : vector<1x128xf32> to vector<8x128xf32>
    %6 = arith.addf %3, %5 : vector<8x128xf32>
    %cst_5 = arith.constant 0.000000e+00 : f32
    %7 = vector.broadcast %cst_5 : f32 to vector<8x128xf32>
    %8 = arith.maximumf %6, %7 : vector<8x128xf32>
    %9 = arith.truncf %8 : vector<8x128xf32> to vector<8x128xbf16>
    %c0_6 = arith.constant 0 : index
    %c0_7 = arith.constant 0 : index
    %10 = vector.load %arg3[%c0_6, %c0_7] : memref<128x128xbf16, #tpu.memory_space<vmem>>, vector<128x128xbf16>
    %cst_8 = arith.constant dense<0.000000e+00> : vector<8x128xf32>
    %11 = tpu.matmul %9, %10, %cst_8 {dimension_numbers = #tpu.dot_dimension_numbers<[1], [0], [0], [1], [0, 0, 1, 1], [], []>} : vector<8x128xbf16>, vector<128x128xbf16>, vector<8x128xf32> -> vector<8x128xf32>
    %12 = vector.extract_strided_slice %0 {offsets = [1, 0], sizes = [1, 128], strides = [1, 1]} : vector<4x128xf32> to vector<1x128xf32>
    %13 = vector.broadcast %12 : vector<1x128xf32> to vector<8x128xf32>
    %14 = arith.addf %11, %13 : vector<8x128xf32>
    %cst_9 = arith.constant 0.000000e+00 : f32
    %15 = vector.broadcast %cst_9 : f32 to vector<8x128xf32>
    %16 = arith.maximumf %14, %15 : vector<8x128xf32>
    %17 = arith.truncf %16 : vector<8x128xf32> to vector<8x128xbf16>
    %c0_10 = arith.constant 0 : index
    %c0_11 = arith.constant 0 : index
    %18 = vector.load %arg4[%c0_10, %c0_11] : memref<128x128xbf16, #tpu.memory_space<vmem>>, vector<128x128xbf16>
    %cst_12 = arith.constant dense<0.000000e+00> : vector<8x128xf32>
    %19 = tpu.matmul %17, %18, %cst_12 {dimension_numbers = #tpu.dot_dimension_numbers<[1], [0], [0], [1], [0, 0, 1, 1], [], []>} : vector<8x128xbf16>, vector<128x128xbf16>, vector<8x128xf32> -> vector<8x128xf32>
    %20 = vector.extract_strided_slice %0 {offsets = [2, 0], sizes = [1, 128], strides = [1, 1]} : vector<4x128xf32> to vector<1x128xf32>
    %21 = vector.broadcast %20 : vector<1x128xf32> to vector<8x128xf32>
    %22 = arith.addf %19, %21 : vector<8x128xf32>
    %cst_13 = arith.constant 0.000000e+00 : f32
    %23 = vector.broadcast %cst_13 : f32 to vector<8x128xf32>
    %24 = arith.maximumf %22, %23 : vector<8x128xf32>
    %25 = arith.truncf %24 : vector<8x128xf32> to vector<8x128xbf16>
    %c0_14 = arith.constant 0 : index
    %c0_15 = arith.constant 0 : index
    %26 = vector.load %arg5[%c0_14, %c0_15] : memref<128x128xbf16, #tpu.memory_space<vmem>>, vector<128x128xbf16>
    %cst_16 = arith.constant dense<0.000000e+00> : vector<8x128xf32>
    %27 = tpu.matmul %25, %26, %cst_16 {dimension_numbers = #tpu.dot_dimension_numbers<[1], [0], [0], [1], [0, 0, 1, 1], [], []>} : vector<8x128xbf16>, vector<128x128xbf16>, vector<8x128xf32> -> vector<8x128xf32>
    %28 = vector.extract_strided_slice %0 {offsets = [3, 0], sizes = [1, 128], strides = [1, 1]} : vector<4x128xf32> to vector<1x128xf32>
    %29 = vector.broadcast %28 : vector<1x128xf32> to vector<8x128xf32>
    %30 = arith.addf %27, %29 : vector<8x128xf32>
    %cst_17 = arith.constant 0.000000e+00 : f32
    %31 = vector.broadcast %cst_17 : f32 to vector<8x128xf32>
    %32 = arith.subf %31, %30 : vector<8x128xf32>
    %33 = math.exp %32 : vector<8x128xf32>
    %cst_18 = arith.constant 1.000000e+00 : f32
    %34 = vector.broadcast %cst_18 : f32 to vector<8x128xf32>
    %35 = arith.addf %34, %33 : vector<8x128xf32>
    %36 = tpu.reciprocal %35 {approx = true} : vector<8x128xf32> -> vector<8x128xf32>
    %c0_19 = arith.constant 0 : index
    %c0_20 = arith.constant 0 : index
    %37 = vector.load %arg7[%c0_19, %c0_20] : memref<8x128xf32, #tpu.memory_space<vmem>>, vector<8x128xf32>
    tpu.vector_store %arg7[%c0_19, %c0_20], %36 {strides = array<i32>} : memref<8x128xf32, #tpu.memory_space<vmem>>, vector<8x128xf32>,
    return
  }
  func.func @transform_0(%arg0: i32) -> (i32, i32) {
    %c0_i32 = arith.constant 0 : i32
    %c0_i32_0 = arith.constant 0 : i32
    return %arg0, %c0_i32 : i32, i32
  }
  func.func @transform_1(%arg0: i32) -> (i32, i32) {
    %c0_i32 = arith.constant 0 : i32
    %c0_i32_0 = arith.constant 0 : i32
    %c0_i32_1 = arith.constant 0 : i32
    return %c0_i32, %c0_i32_0 : i32, i32
  }
  func.func @transform_2(%arg0: i32) -> (i32, i32) {
    %c0_i32 = arith.constant 0 : i32
    %c0_i32_0 = arith.constant 0 : i32
    %c0_i32_1 = arith.constant 0 : i32
    return %c0_i32, %c0_i32_0 : i32, i32
  }
  func.func @transform_3(%arg0: i32) -> (i32, i32) {
    %c0_i32 = arith.constant 0 : i32
    %c0_i32_0 = arith.constant 0 : i32
    %c0_i32_1 = arith.constant 0 : i32
    return %c0_i32, %c0_i32_0 : i32, i32
  }
  func.func @transform_4(%arg0: i32) -> (i32, i32) {
    %c0_i32 = arith.constant 0 : i32
    %c0_i32_0 = arith.constant 0 : i32
    %c0_i32_1 = arith.constant 0 : i32
    return %c0_i32, %c0_i32_0 : i32, i32
  }
  func.func @transform_5(%arg0: i32) -> (i32, i32) {
    %c0_i32 = arith.constant 0 : i32
    %c0_i32_0 = arith.constant 0 : i32
    %c0_i32_1 = arith.constant 0 : i32
    return %c0_i32, %c0_i32_0 : i32, i32
  }
  func.func @transform_6(%arg0: i32) -> (i32, i32) {
    %c0_i32 = arith.constant 0 : i32
    %c0_i32_0 = arith.constant 0 : i32
    return %arg0, %c0_i32 : i32, i32
  }
}

</mosaic_0001>

<llo_original>
// kernel: tpu_custom_call.1
$region0: #{tpu_custom_call.1}
  #allocation0 [shape = 'u32[]', space=smem, size = 0x4, offset = 0x4, fixed_abs, tag = 'smem constant byte address 0x4 - core index']
  #allocation1 [shape = 'u32[72,128]{1,0:T(1,128)}', space=vmem, size = 0x9000, scoped, tag = 'internal scratch']
  %s0 = inlined_call_operand.hbm [shape: bf16[8,1024], index: 0, kind: input, shape index: {}]
  %s1 = inlined_call_operand.hbm [shape: bf16[1024,128], index: 1, kind: input, shape index: {}]
  %s2 = inlined_call_operand.hbm [shape: bf16[128,128], index: 2, kind: input, shape index: {}]
  %s3 = inlined_call_operand.hbm [shape: bf16[128,128], index: 3, kind: input, shape index: {}]
  %s4 = inlined_call_operand.hbm [shape: bf16[128,128], index: 4, kind: input, shape index: {}]
  %s5 = inlined_call_operand.vmem [shape: f32[4,128], index: 5, kind: input, shape index: {}]
  %s6 = inlined_call_operand.hbm [shape: f32[8,128], index: 6, kind: output, shape index: {}]
  %s7 = sld [smem:[#allocation0]]
  $region54: #{tpu_custom_call.1} parent=0
    _
  %s9 = ssub.s32 1, %s7
  %s10 = scalar_select 0, %s9, %s7
  $region1: #{tpu_custom_call.1} parent=0
    #allocation2 [shape = 'u8[16384]{0}', space=vmem, size = 0x4000, scoped, tag = 'input window, operand 0, single buffered']
    #allocation3 [shape = 's32[1]{0}', space=sflag, size = 0x4, scoped, tag = 'scoped memory for tpu_custom_call.1']
    #allocation4 [shape = 's32[1]{0}', space=sflag, size = 0x4, scoped, tag = 'scoped memory for tpu_custom_call.1']
    #allocation5 [shape = 'u8[262144]{0}', space=vmem, size = 0x40000, scoped, tag = 'input window, operand 1, single buffered']
    #allocation6 [shape = 's32[1]{0}', space=sflag, size = 0x4, scoped, tag = 'scoped memory for tpu_custom_call.1']
    #allocation7 [shape = 'u8[32768]{0}', space=vmem, size = 0x8000, scoped, tag = 'input window, operand 2, single buffered']
    #allocation8 [shape = 'u8[32768]{0}', space=vmem, size = 0x8000, scoped, tag = 'input window, operand 3, single buffered']
    #allocation9 [shape = 's32[1]{0}', space=sflag, size = 0x4, scoped, tag = 'scoped memory for tpu_custom_call.1']
    #allocation10 [shape = 'u8[32768]{0}', space=vmem, size = 0x8000, scoped, tag = 'input window, operand 4, single buffered']
    #allocation11 [shape = 'u8[4096]{0}', space=vmem, size = 0x1000, scoped, tag = 'output window, operand 0, single buffered']
    %11 = vsyncpa [#allocation3], 0
    %12 = vsyncpa [#allocation6], 0
    %13 = vsyncpa [#allocation9], 0
    %14 = vsyncpa [#allocation4], 0
    // Predicated region
    $region2: #{tpu_custom_call.1} parent=1 // pred_check
      _
    $region3: #{tpu_custom_call.1} parent=1 // pred_check_branch
      %16 = sbr.rel (0) target = $region5
    $region4: #{tpu_custom_call.1} parent=1 // pred_region
      %18 = vsyncadd [#allocation3], 0
      %s20 = sshll.u32 %s0, 4
      %s21 = int_to_ptr.hbm [resolvable:$true] %s20
      %s22 = sshll.u32 [#allocation2], 4
      %s23 = int_to_ptr.vmem [resolvable:$true] %s22
      %25 = dma.hbm_to_vmem [thread:$0]  %s21, 512, %s23, [#allocation3]
    $region5: #{tpu_custom_call.1} parent=1 // pred_fallthru
      _
    // Predicated region
    $region6: #{tpu_custom_call.1} parent=1 // pred_check
      _
    $region7: #{tpu_custom_call.1} parent=1 // pred_check_branch
      %27 = sbr.rel (0) target = $region9
    $region8: #{tpu_custom_call.1} parent=1 // pred_region
      %29 = vsyncadd [#allocation6], 0
      %s30 = sshll.u32 %s1, 4
      %s31 = int_to_ptr.hbm [resolvable:$true] %s30
      %s32 = sshll.u32 [#allocation5], 4
      %s33 = int_to_ptr.vmem [resolvable:$true] %s32
      %38 = dma.hbm_to_vmem [thread:$0]  %s31, 8192, %s33, [#allocation6], 64, 64, 4
    $region9: #{tpu_custom_call.1} parent=1 // pred_fallthru
      _
    // Predicated region
    $region10: #{tpu_custom_call.1} parent=1 // pred_check
      _
    $region11: #{tpu_custom_call.1} parent=1 // pred_check_branch
      %40 = sbr.rel (0) target = $region13
    $region12: #{tpu_custom_call.1} parent=1 // pred_region
      %42 = vsyncadd [#allocation6], 0
      %s43 = sshll.u32 %s2, 4
      %s44 = int_to_ptr.hbm [resolvable:$true] %s43
      %s45 = sshll.u32 [#allocation7], 4
      %s46 = int_to_ptr.vmem [resolvable:$true] %s45
      %51 = dma.hbm_to_vmem [thread:$0]  %s44, 1024, %s46, [#allocation6], 64, 64, 4
    $region13: #{tpu_custom_call.1} parent=1 // pred_fallthru
      _
    // Predicated region
    $region14: #{tpu_custom_call.1} parent=1 // pred_check
      _
    $region15: #{tpu_custom_call.1} parent=1 // pred_check_branch
      %53 = sbr.rel (0) target = $region17
    $region16: #{tpu_custom_call.1} parent=1 // pred_region
      %55 = vsyncadd [#allocation9], 0
      %s56 = sshll.u32 %s3, 4
      %s57 = int_to_ptr.hbm [resolvable:$true] %s56
      %s58 = sshll.u32 [#allocation8], 4
      %s59 = int_to_ptr.vmem [resolvable:$true] %s58
      %64 = dma.hbm_to_vmem [thread:$0]  %s57, 1024, %s59, [#allocation9], 64, 64, 4
    $region17: #{tpu_custom_call.1} parent=1 // pred_fallthru
      _
    // Predicated region
    $region18: #{tpu_custom_call.1} parent=1 // pred_check
      _
    $region19: #{tpu_custom_call.1} parent=1 // pred_check_branch
      %66 = sbr.rel (0) target = $region21
    $region20: #{tpu_custom_call.1} parent=1 // pred_region
      %68 = vsyncadd [#allocation9], 0
      %s69 = sshll.u32 %s4, 4
      %s70 = int_to_ptr.hbm [resolvable:$true] %s69
      %s71 = sshll.u32 [#allocation10], 4
      %s72 = int_to_ptr.vmem [resolvable:$true] %s71
      %77 = dma.hbm_to_vmem [thread:$0]  %s70, 1024, %s72, [#allocation9], 64, 64, 4
    $region21: #{tpu_custom_call.1} parent=1 // pred_fallthru
      _
    // Predicated region
    $region22: #{tpu_custom_call.1} parent=1 // pred_check
      _
    $region23: #{tpu_custom_call.1} parent=1 // pred_check_branch
      %79 = sbr.rel (0) target = $region25
    $region24: #{tpu_custom_call.1} parent=1 // pred_region
      _
    $region25: #{tpu_custom_call.1} parent=1 // pred_fallthru
      _
    // Predicated region
    $region26: #{tpu_custom_call.1} parent=1 // pred_check
      _
    $region27: #{tpu_custom_call.1} parent=1 // pred_check_branch
      %81 = sbr.rel (0) target = $region29
    $region28: #{tpu_custom_call.1} parent=1 // pred_region
      %83 = dma.done [#allocation3], 512
    $region29: #{tpu_custom_call.1} parent=1 // pred_fallthru
      _
    // Predicated region
    $region30: #{tpu_custom_call.1} parent=1 // pred_check
      _
    $region31: #{tpu_custom_call.1} parent=1 // pred_check_branch
      %85 = sbr.rel (0) target = $region33
    $region32: #{tpu_custom_call.1} parent=1 // pred_region
      %87 = dma.done [#allocation6], 8192
    $region33: #{tpu_custom_call.1} parent=1 // pred_fallthru
      _
    // Predicated region
    $region34: #{tpu_custom_call.1} parent=1 // pred_check
      _
    $region35: #{tpu_custom_call.1} parent=1 // pred_check_branch
      %89 = sbr.rel (0) target = $region37
    $region36: #{tpu_custom_call.1} parent=1 // pred_region
      %91 = dma.done [#allocation6], 1024
    $region37: #{tpu_custom_call.1} parent=1 // pred_fallthru
      _
    // Predicated region
    $region38: #{tpu_custom_call.1} parent=1 // pred_check
      _
    $region39: #{tpu_custom_call.1} parent=1 // pred_check_branch
      %93 = sbr.rel (0) target = $region41
    $region40: #{tpu_custom_call.1} parent=1 // pred_region
      %95 = dma.done [#allocation9], 1024
    $region41: #{tpu_custom_call.1} parent=1 // pred_fallthru
      _
    // Predicated region
    $region42: #{tpu_custom_call.1} parent=1 // pred_check
      _
    $region43: #{tpu_custom_call.1} parent=1 // pred_check_branch
      %97 = sbr.rel (0) target = $region45
    $region44: #{tpu_custom_call.1} parent=1 // pred_region
      %99 = dma.done [#allocation9], 1024
    $region45: #{tpu_custom_call.1} parent=1 // pred_fallthru
      _
    %v100 = vld [vmem:[%s5] sm:$0xf]
    %v101 = vld [vmem:[#allocation2] sm:$0xff]
    %v102 = vld [vmem:[#allocation2 + $0x8] sm:$0xff]
    %v103 = vld [vmem:[#allocation2 + $0x10] sm:$0xff]
    %v104 = vld [vmem:[#allocation2 + $0x18] sm:$0xff]
    %v105 = vld [vmem:[#allocation5] sm:$0xf]
    %v106 = vld [vmem:[#allocation5 + $0x4] sm:$0xf]
    %v107 = vld [vmem:[#allocation5 + $0x8] sm:$0xf]
    %v108 = vld [vmem:[#allocation5 + $0xc] sm:$0xf]
    %v109 = vld [vmem:[#allocation5 + $0x10] sm:$0xf]
    %v110 = vld [vmem:[#allocation5 + $0x14] sm:$0xf]
    %v111 = vld [vmem:[#allocation5 + $0x18] sm:$0xf]
    %v112 = vld [vmem:[#allocation5 + $0x1c] sm:$0xf]
    %v113 = vld [vmem:[#allocation5 + $0x20] sm:$0xf]
    %v114 = vld [vmem:[#allocation5 + $0x24] sm:$0xf]
    %v115 = vld [vmem:[#allocation5 + $0x28] sm:$0xf]
    %v116 = vld [vmem:[#allocation5 + $0x2c] sm:$0xf]
    %v117 = vld [vmem:[#allocation5 + $0x30] sm:$0xf]
    %v118 = vld [vmem:[#allocation5 + $0x34] sm:$0xf]
    %v119 = vld [vmem:[#allocation5 + $0x38] sm:$0xf]
    %v120 = vld [vmem:[#allocation5 + $0x3c] sm:$0xf]
    %v121 = vld [vmem:[#allocation5 + $0x40] sm:$0xf]
    %v122 = vld [vmem:[#allocation5 + $0x44] sm:$0xf]
    %v123 = vld [vmem:[#allocation5 + $0x48] sm:$0xf]
    %v124 = vld [vmem:[#allocation5 + $0x4c] sm:$0xf]
    %v125 = vld [vmem:[#allocation5 + $0x50] sm:$0xf]
    %v126 = vld [vmem:[#allocation5 + $0x54] sm:$0xf]
    %v127 = vld [vmem:[#allocation5 + $0x58] sm:$0xf]
    %v128 = vld [vmem:[#allocation5 + $0x5c] sm:$0xf]
    %v129 = vld [vmem:[#allocation5 + $0x60] sm:$0xf]
    %v130 = vld [vmem:[#allocation5 + $0x64] sm:$0xf]
    %v131 = vld [vmem:[#allocation5 + $0x68] sm:$0xf]
    %v132 = vld [vmem:[#allocation5 + $0x6c] sm:$0xf]
    %v133 = vld [vmem:[#allocation5 + $0x70] sm:$0xf]
    %v134 = vld [vmem:[#allocation5 + $0x74] sm:$0xf]
    %v135 = vld [vmem:[#allocation5 + $0x78] sm:$0xf]
    %v136 = vld [vmem:[#allocation5 + $0x7c] sm:$0xf]
    %v137 = vld [vmem:[#allocation5 + $0x80] sm:$0xf]
    %v138 = vld [vmem:[#allocation5 + $0x84] sm:$0xf]
    %v139 = vld [vmem:[#allocation5 + $0x88] sm:$0xf]
    %v140 = vld [vmem:[#allocation5 + $0x8c] sm:$0xf]
    %v141 = vld [vmem:[#allocation5 + $0x90] sm:$0xf]
    %v142 = vld [vmem:[#allocation5 + $0x94] sm:$0xf]
    %v143 = vld [vmem:[#allocation5 + $0x98] sm:$0xf]
    %v144 = vld [vmem:[#allocation5 + $0x9c] sm:$0xf]
    %v145 = vld [vmem:[#allocation5 + $0xa0] sm:$0xf]
    %v146 = vld [vmem:[#allocation5 + $0xa4] sm:$0xf]
    %v147 = vld [vmem:[#allocation5 + $0xa8] sm:$0xf]
    %v148 = vld [vmem:[#allocation5 + $0xac] sm:$0xf]
    %v149 = vld [vmem:[#allocation5 + $0xb0] sm:$0xf]
    %v150 = vld [vmem:[#allocation5 + $0xb4] sm:$0xf]
    %v151 = vld [vmem:[#allocation5 + $0xb8] sm:$0xf]
    %v152 = vld [vmem:[#allocation5 + $0xbc] sm:$0xf]
    %v153 = vld [vmem:[#allocation5 + $0xc0] sm:$0xf]
    %v154 = vld [vmem:[#allocation5 + $0xc4] sm:$0xf]
    %v155 = vld [vmem:[#allocation5 + $0xc8] sm:$0xf]
    %v156 = vld [vmem:[#allocation5 + $0xcc] sm:$0xf]
    %v157 = vld [vmem:[#allocation5 + $0xd0] sm:$0xf]
    %v158 = vld [vmem:[#allocation5 + $0xd4] sm:$0xf]
    %v159 = vld [vmem:[#allocation5 + $0xd8] sm:$0xf]
    %v160 = vld [vmem:[#allocation5 + $0xdc] sm:$0xf]
    %v161 = vld [vmem:[#allocation5 + $0xe0] sm:$0xf]
    %v162 = vld [vmem:[#allocation5 + $0xe4] sm:$0xf]
    %v163 = vld [vmem:[#allocation5 + $0xe8] sm:$0xf]
    %v164 = vld [vmem:[#allocation5 + $0xec] sm:$0xf]
    %v165 = vld [vmem:[#allocation5 + $0xf0] sm:$0xf]
    %v166 = vld [vmem:[#allocation5 + $0xf4] sm:$0xf]
    %v167 = vld [vmem:[#allocation5 + $0xf8] sm:$0xf]
    %v168 = vld [vmem:[#allocation5 + $0xfc] sm:$0xf]
    %v169 = vld [vmem:[#allocation5 + $0x100] sm:$0xf]
    %v170 = vld [vmem:[#allocation5 + $0x104] sm:$0xf]
    %v171 = vld [vmem:[#allocation5 + $0x108] sm:$0xf]
    %v172 = vld [vmem:[#allocation5 + $0x10c] sm:$0xf]
    %v173 = vld [vmem:[#allocation5 + $0x110] sm:$0xf]
    %v174 = vld [vmem:[#allocation5 + $0x114] sm:$0xf]
    %v175 = vld [vmem:[#allocation5 + $0x118] sm:$0xf]
    %v176 = vld [vmem:[#allocation5 + $0x11c] sm:$0xf]
    %v177 = vld [vmem:[#allocation5 + $0x120] sm:$0xf]
    %v178 = vld [vmem:[#allocation5 + $0x124] sm:$0xf]
    %v179 = vld [vmem:[#allocation5 + $0x128] sm:$0xf]
    %v180 = vld [vmem:[#allocation5 + $0x12c] sm:$0xf]
    %v181 = vld [vmem:[#allocation5 + $0x130] sm:$0xf]
    %v182 = vld [vmem:[#allocation5 + $0x134] sm:$0xf]
    %v183 = vld [vmem:[#allocation5 + $0x138] sm:$0xf]
    %v184 = vld [vmem:[#allocation5 + $0x13c] sm:$0xf]
    %v185 = vld [vmem:[#allocation5 + $0x140] sm:$0xf]
    %v186 = vld [vmem:[#allocation5 + $0x144] sm:$0xf]
    %v187 = vld [vmem:[#allocation5 + $0x148] sm:$0xf]
    %v188 = vld [vmem:[#allocation5 + $0x14c] sm:$0xf]
    %v189 = vld [vmem:[#allocation5 + $0x150] sm:$0xf]
    %v190 = vld [vmem:[#allocation5 + $0x154] sm:$0xf]
    %v191 = vld [vmem:[#allocation5 + $0x158] sm:$0xf]
    %v192 = vld [vmem:[#allocation5 + $0x15c] sm:$0xf]
    %v193 = vld [vmem:[#allocation5 + $0x160] sm:$0xf]
    %v194 = vld [vmem:[#allocation5 + $0x164] sm:$0xf]
    %v195 = vld [vmem:[#allocation5 + $0x168] sm:$0xf]
    %v196 = vld [vmem:[#allocation5 + $0x16c] sm:$0xf]
    %v197 = vld [vmem:[#allocation5 + $0x170] sm:$0xf]
    %v198 = vld [vmem:[#allocation5 + $0x174] sm:$0xf]
    %v199 = vld [vmem:[#allocation5 + $0x178] sm:$0xf]
    %v200 = vld [vmem:[#allocation5 + $0x17c] sm:$0xf]
    %v201 = vld [vmem:[#allocation5 + $0x180] sm:$0xf]
    %v202 = vld [vmem:[#allocation5 + $0x184] sm:$0xf]
    %v203 = vld [vmem:[#allocation5 + $0x188] sm:$0xf]
    %v204 = vld [vmem:[#allocation5 + $0x18c] sm:$0xf]
    %v205 = vld [vmem:[#allocation5 + $0x190] sm:$0xf]
    %v206 = vld [vmem:[#allocation5 + $0x194] sm:$0xf]
    %v207 = vld [vmem:[#allocation5 + $0x198] sm:$0xf]
    %v208 = vld [vmem:[#allocation5 + $0x19c] sm:$0xf]
    %v209 = vld [vmem:[#allocation5 + $0x1a0] sm:$0xf]
    %v210 = vld [vmem:[#allocation5 + $0x1a4] sm:$0xf]
    %v211 = vld [vmem:[#allocation5 + $0x1a8] sm:$0xf]
    %v212 = vld [vmem:[#allocation5 + $0x1ac] sm:$0xf]
    %v213 = vld [vmem:[#allocation5 + $0x1b0] sm:$0xf]
    %v214 = vld [vmem:[#allocation5 + $0x1b4] sm:$0xf]
    %v215 = vld [vmem:[#allocation5 + $0x1b8] sm:$0xf]
    %v216 = vld [vmem:[#allocation5 + $0x1bc] sm:$0xf]
    %v217 = vld [vmem:[#allocation5 + $0x1c0] sm:$0xf]
    %v218 = vld [vmem:[#allocation5 + $0x1c4] sm:$0xf]
    %v219 = vld [vmem:[#allocation5 + $0x1c8] sm:$0xf]
    %v220 = vld [vmem:[#allocation5 + $0x1cc] sm:$0xf]
    %v221 = vld [vmem:[#allocation5 + $0x1d0] sm:$0xf]
    %v222 = vld [vmem:[#allocation5 + $0x1d4] sm:$0xf]
    %v223 = vld [vmem:[#allocation5 + $0x1d8] sm:$0xf]
    %v224 = vld [vmem:[#allocation5 + $0x1dc] sm:$0xf]
    %v225 = vld [vmem:[#allocation5 + $0x1e0] sm:$0xf]
    %v226 = vld [vmem:[#allocation5 + $0x1e4] sm:$0xf]
    %v227 = vld [vmem:[#allocation5 + $0x1e8] sm:$0xf]
    %v228 = vld [vmem:[#allocation5 + $0x1ec] sm:$0xf]
    %v229 = vld [vmem:[#allocation5 + $0x1f0] sm:$0xf]
    %v230 = vld [vmem:[#allocation5 + $0x1f4] sm:$0xf]
    %v231 = vld [vmem:[#allocation5 + $0x1f8] sm:$0xf]
    %v232 = vld [vmem:[#allocation5 + $0x1fc] sm:$0xf]
    %v233 = vperm.slane %v100, 0
    %v238 = vunpack.c.l.b16 %v101
    %v239 = vunpack.c.h.b16 %v101
    %v240 = vunpack.c.l.b16 %v102
    %v241 = vunpack.c.h.b16 %v102
    %v242 = vunpack.c.l.b16 %v103
    %v243 = vunpack.c.h.b16 %v103
    %v244 = vunpack.c.l.b16 %v104
    %v245 = vunpack.c.h.b16 %v104
    %v246 = vpack.c.b16 %v238, %v238
    %v247 = vpack.c.b16 %v239, %v239
    %v248 = vpack.c.b16 %v240, %v240
    %v249 = vpack.c.b16 %v241, %v241
    %v250 = vpack.c.b16 %v242, %v242
    %v251 = vpack.c.b16 %v243, %v243
    %v252 = vpack.c.b16 %v244, %v244
    %v253 = vpack.c.b16 %v245, %v245
    %v390 = vunpack.c.l.b16 %v105
    %v391 = vunpack.c.l.b16 %v106
    %v392 = vunpack.c.l.b16 %v107
    %v393 = vunpack.c.l.b16 %v108
    %v394 = vunpack.c.l.b16 %v109
    %v395 = vunpack.c.l.b16 %v110
    %v396 = vunpack.c.l.b16 %v111
    %v397 = vunpack.c.l.b16 %v112
    %v398 = vunpack.c.l.b16 %v113
    %v399 = vunpack.c.l.b16 %v114
    %v400 = vunpack.c.l.b16 %v115
    %v401 = vunpack.c.l.b16 %v116
    %v402 = vunpack.c.l.b16 %v117
    %v403 = vunpack.c.l.b16 %v118
    %v404 = vunpack.c.l.b16 %v119
    %v405 = vunpack.c.l.b16 %v120
    %v406 = vunpack.c.l.b16 %v121
    %v407 = vunpack.c.l.b16 %v122
    %v408 = vunpack.c.l.b16 %v123
    %v409 = vunpack.c.l.b16 %v124
    %v410 = vunpack.c.l.b16 %v125
    %v411 = vunpack.c.l.b16 %v126
    %v412 = vunpack.c.l.b16 %v127
    %v413 = vunpack.c.l.b16 %v128
    %v414 = vunpack.c.l.b16 %v129
    %v415 = vunpack.c.l.b16 %v130
    %v416 = vunpack.c.l.b16 %v131
    %v417 = vunpack.c.l.b16 %v132
    %v418 = vunpack.c.l.b16 %v133
    %v419 = vunpack.c.l.b16 %v134
    %v420 = vunpack.c.l.b16 %v135
    %v421 = vunpack.c.l.b16 %v136
    %v422 = vunpack.c.l.b16 %v137
    %v423 = vunpack.c.l.b16 %v138
    %v424 = vunpack.c.l.b16 %v139
    %v425 = vunpack.c.l.b16 %v140
    %v426 = vunpack.c.l.b16 %v141
    %v427 = vunpack.c.l.b16 %v142
    %v428 = vunpack.c.l.b16 %v143
    %v429 = vunpack.c.l.b16 %v144
    %v430 = vunpack.c.l.b16 %v145
    %v431 = vunpack.c.l.b16 %v146
    %v432 = vunpack.c.l.b16 %v147
    %v433 = vunpack.c.l.b16 %v148
    %v434 = vunpack.c.l.b16 %v149
    %v435 = vunpack.c.l.b16 %v150
    %v436 = vunpack.c.l.b16 %v151
    %v437 = vunpack.c.l.b16 %v152
    %v438 = vunpack.c.l.b16 %v153
    %v439 = vunpack.c.l.b16 %v154
    %v440 = vunpack.c.l.b16 %v155
    %v441 = vunpack.c.l.b16 %v156
    %v442 = vunpack.c.l.b16 %v157
    %v443 = vunpack.c.l.b16 %v158
    %v444 = vunpack.c.l.b16 %v159
    %v445 = vunpack.c.l.b16 %v160
    %v446 = vunpack.c.l.b16 %v161
    %v447 = vunpack.c.l.b16 %v162
    %v448 = vunpack.c.l.b16 %v163
    %v449 = vunpack.c.l.b16 %v164
    %v450 = vunpack.c.l.b16 %v165
    %v451 = vunpack.c.l.b16 %v166
    %v452 = vunpack.c.l.b16 %v167
    %v453 = vunpack.c.l.b16 %v168
    %v454 = vunpack.c.l.b16 %v169
    %v455 = vunpack.c.l.b16 %v170
    %v456 = vunpack.c.l.b16 %v171
    %v457 = vunpack.c.l.b16 %v172
    %v458 = vunpack.c.l.b16 %v173
    %v459 = vunpack.c.l.b16 %v174
    %v460 = vunpack.c.l.b16 %v175
    %v461 = vunpack.c.l.b16 %v176
    %v462 = vunpack.c.l.b16 %v177
    %v463 = vunpack.c.l.b16 %v178
    %v464 = vunpack.c.l.b16 %v179
    %v465 = vunpack.c.l.b16 %v180
    %v466 = vunpack.c.l.b16 %v181
    %v467 = vunpack.c.l.b16 %v182
    %v468 = vunpack.c.l.b16 %v183
    %v469 = vunpack.c.l.b16 %v184
    %v470 = vunpack.c.l.b16 %v185
    %v471 = vunpack.c.l.b16 %v186
    %v472 = vunpack.c.l.b16 %v187
    %v473 = vunpack.c.l.b16 %v188
    %v474 = vunpack.c.l.b16 %v189
    %v475 = vunpack.c.l.b16 %v190
    %v476 = vunpack.c.l.b16 %v191
    %v477 = vunpack.c.l.b16 %v192
    %v478 = vunpack.c.l.b16 %v193
    %v479 = vunpack.c.l.b16 %v194
    %v480 = vunpack.c.l.b16 %v195
    %v481 = vunpack.c.l.b16 %v196
    %v482 = vunpack.c.l.b16 %v197
    %v483 = vunpack.c.l.b16 %v198
    %v484 = vunpack.c.l.b16 %v199
    %v485 = vunpack.c.l.b16 %v200
    %v486 = vunpack.c.l.b16 %v201
    %v487 = vunpack.c.l.b16 %v202
    %v488 = vunpack.c.l.b16 %v203
    %v489 = vunpack.c.l.b16 %v204
    %v490 = vunpack.c.l.b16 %v205
    %v491 = vunpack.c.l.b16 %v206
    %v492 = vunpack.c.l.b16 %v207
    %v493 = vunpack.c.l.b16 %v208
    %v494 = vunpack.c.l.b16 %v209
    %v495 = vunpack.c.l.b16 %v210
    %v496 = vunpack.c.l.b16 %v211
    %v497 = vunpack.c.l.b16 %v212
    %v498 = vunpack.c.l.b16 %v213
    %v499 = vunpack.c.l.b16 %v214
    %v500 = vunpack.c.l.b16 %v215
    %v501 = vunpack.c.l.b16 %v216
    %v502 = vunpack.c.l.b16 %v217
    %v503 = vunpack.c.l.b16 %v218
    %v504 = vunpack.c.l.b16 %v219
    %v505 = vunpack.c.l.b16 %v220
    %v506 = vunpack.c.l.b16 %v221
    %v507 = vunpack.c.l.b16 %v222
    %v508 = vunpack.c.l.b16 %v223
    %v509 = vunpack.c.l.b16 %v224
    %v510 = vunpack.c.l.b16 %v225
    %v511 = vunpack.c.l.b16 %v226
    %v512 = vunpack.c.l.b16 %v227
    %v513 = vunpack.c.l.b16 %v228
    %v514 = vunpack.c.l.b16 %v229
    %v515 = vunpack.c.l.b16 %v230
    %v516 = vunpack.c.l.b16 %v231
    %v517 = vunpack.c.l.b16 %v232
    %v518 = vpack.c.b16 %v391, %v390
    %v519 = vpack.c.b16 %v393, %v392
    %v520 = vpack.c.b16 %v395, %v394
    %v521 = vpack.c.b16 %v397, %v396
    %v522 = vpack.c.b16 %v399, %v398
    %v523 = vpack.c.b16 %v401, %v400
    %v524 = vpack.c.b16 %v403, %v402
    %v525 = vpack.c.b16 %v405, %v404
    %v526 = vpack.c.b16 %v407, %v406
    %v527 = vpack.c.b16 %v409, %v408
    %v528 = vpack.c.b16 %v411, %v410
    %v529 = vpack.c.b16 %v413, %v412
    %v530 = vpack.c.b16 %v415, %v414
    %v531 = vpack.c.b16 %v417, %v416
    %v532 = vpack.c.b16 %v419, %v418
    %v533 = vpack.c.b16 %v421, %v420
    %v534 = vpack.c.b16 %v423, %v422
    %v535 = vpack.c.b16 %v425, %v424
    %v536 = vpack.c.b16 %v427, %v426
    %v537 = vpack.c.b16 %v429, %v428
    %v538 = vpack.c.b16 %v431, %v430
    %v539 = vpack.c.b16 %v433, %v432
    %v540 = vpack.c.b16 %v435, %v434
    %v541 = vpack.c.b16 %v437, %v436
    %v542 = vpack.c.b16 %v439, %v438
    %v543 = vpack.c.b16 %v441, %v440
    %v544 = vpack.c.b16 %v443, %v442
    %v545 = vpack.c.b16 %v445, %v444
    %v546 = vpack.c.b16 %v447, %v446
    %v547 = vpack.c.b16 %v449, %v448
    %v548 = vpack.c.b16 %v451, %v450
    %v549 = vpack.c.b16 %v453, %v452
    %v550 = vpack.c.b16 %v455, %v454
    %v551 = vpack.c.b16 %v457, %v456
    %v552 = vpack.c.b16 %v459, %v458
    %v553 = vpack.c.b16 %v461, %v460
    %v554 = vpack.c.b16 %v463, %v462
    %v555 = vpack.c.b16 %v465, %v464
    %v556 = vpack.c.b16 %v467, %v466
    %v557 = vpack.c.b16 %v469, %v468
    %v558 = vpack.c.b16 %v471, %v470
    %v559 = vpack.c.b16 %v473, %v472
    %v560 = vpack.c.b16 %v475, %v474
    %v561 = vpack.c.b16 %v477, %v476
    %v562 = vpack.c.b16 %v479, %v478
    %v563 = vpack.c.b16 %v481, %v480
    %v564 = vpack.c.b16 %v483, %v482
    %v565 = vpack.c.b16 %v485, %v484
    %v566 = vpack.c.b16 %v487, %v486
    %v567 = vpack.c.b16 %v489, %v488
    %v568 = vpack.c.b16 %v491, %v490
    %v569 = vpack.c.b16 %v493, %v492
    %v570 = vpack.c.b16 %v495, %v494
    %v571 = vpack.c.b16 %v497, %v496
    %v572 = vpack.c.b16 %v499, %v498
    %v573 = vpack.c.b16 %v501, %v500
    %v574 = vpack.c.b16 %v503, %v502
    %v575 = vpack.c.b16 %v505, %v504
    %v576 = vpack.c.b16 %v507, %v506
    %v577 = vpack.c.b16 %v509, %v508
    %v578 = vpack.c.b16 %v511, %v510
    %v579 = vpack.c.b16 %v513, %v512
    %v580 = vpack.c.b16 %v515, %v514
    %v581 = vpack.c.b16 %v517, %v516
    %646 = vmatpush.bf16.msra.mxu0 %v525
    %647 = vmatpush.bf16.msra.mxu0 %v524
    %648 = vmatpush.bf16.msra.mxu0 %v523
    %649 = vmatpush.bf16.msra.mxu0 %v522
    %650 = vmatpush.bf16.msra.mxu0 %v521
    %651 = vmatpush.bf16.msra.mxu0 %v520
    %652 = vmatpush.bf16.msra.mxu0 %v519
    %653 = vmatpush.bf16.msra.mxu0 %v518
    %654 = vmatmul.bf16.gmra.mxu0 %v246
    %v655 = vpop.f32.mrf.mxu0
    %v656 = vadd.f32 %v233, %v655
    %v657 = vpop.f32.mrf.mxu0
    %658 = vdwg.mxu0
    %659 = vmatpush.bf16.msra.mxu0 %v533
    %660 = vmatpush.bf16.msra.mxu0 %v532
    %661 = vmatpush.bf16.msra.mxu0 %v531
    %662 = vmatpush.bf16.msra.mxu0 %v530
    %663 = vmatpush.bf16.msra.mxu0 %v529
    %664 = vmatpush.bf16.msra.mxu0 %v528
    %665 = vmatpush.bf16.msra.mxu0 %v527
    %666 = vmatpush.bf16.msra.mxu0 %v526
    %667 = vmatmul.bf16.gmra.mxu0 %v247
    %v668 = vpop.f32.mrf.mxu0
    %v669 = vadd.f32 %v656, %v668
    %v670 = vpop.f32.mrf.mxu0
    %671 = vdwg.mxu0
    %672 = vmatpush.bf16.msra.mxu0 %v541
    %673 = vmatpush.bf16.msra.mxu0 %v540
    %674 = vmatpush.bf16.msra.mxu0 %v539
    %675 = vmatpush.bf16.msra.mxu0 %v538
    %676 = vmatpush.bf16.msra.mxu0 %v537
    %677 = vmatpush.bf16.msra.mxu0 %v536
    %678 = vmatpush.bf16.msra.mxu0 %v535
    %679 = vmatpush.bf16.msra.mxu0 %v534
    %680 = vmatmul.bf16.gmra.mxu0 %v248
    %v681 = vpop.f32.mrf.mxu0
    %v682 = vadd.f32 %v669, %v681
    %v683 = vpop.f32.mrf.mxu0
    %684 = vdwg.mxu0
    %685 = vmatpush.bf16.msra.mxu0 %v549
    %686 = vmatpush.bf16.msra.mxu0 %v548
    %687 = vmatpush.bf16.msra.mxu0 %v547
    %688 = vmatpush.bf16.msra.mxu0 %v546
    %689 = vmatpush.bf16.msra.mxu0 %v545
    %690 = vmatpush.bf16.msra.mxu0 %v544
    %691 = vmatpush.bf16.msra.mxu0 %v543
    %692 = vmatpush.bf16.msra.mxu0 %v542
    %693 = vmatmul.bf16.gmra.mxu0 %v249
    %v694 = vpop.f32.mrf.mxu0
    %v695 = vadd.f32 %v682, %v694
    %v696 = vpop.f32.mrf.mxu0
    %697 = vdwg.mxu0
    %698 = vmatpush.bf16.msra.mxu0 %v557
    %699 = vmatpush.bf16.msra.mxu0 %v556
    %700 = vmatpush.bf16.msra.mxu0 %v555
    %701 = vmatpush.bf16.msra.mxu0 %v554
    %702 = vmatpush.bf16.msra.mxu0 %v553
    %703 = vmatpush.bf16.msra.mxu0 %v552
    %704 = vmatpush.bf16.msra.mxu0 %v551
    %705 = vmatpush.bf16.msra.mxu0 %v550
    %706 = vmatmul.bf16.gmra.mxu0 %v250
    %v707 = vpop.f32.mrf.mxu0
    %v708 = vadd.f32 %v695, %v707
    %v709 = vpop.f32.mrf.mxu0
    %710 = vdwg.mxu0
    %711 = vmatpush.bf16.msra.mxu0 %v565
    %712 = vmatpush.bf16.msra.mxu0 %v564
    %713 = vmatpush.bf16.msra.mxu0 %v563
    %714 = vmatpush.bf16.msra.mxu0 %v562
    %715 = vmatpush.bf16.msra.mxu0 %v561
    %716 = vmatpush.bf16.msra.mxu0 %v560
    %717 = vmatpush.bf16.msra.mxu0 %v559
    %718 = vmatpush.bf16.msra.mxu0 %v558
    %719 = vmatmul.bf16.gmra.mxu0 %v251
    %v720 = vpop.f32.mrf.mxu0
    %v721 = vadd.f32 %v708, %v720
    %v722 = vpop.f32.mrf.mxu0
    %723 = vdwg.mxu0
    %724 = vmatpush.bf16.msra.mxu0 %v573
    %725 = vmatpush.bf16.msra.mxu0 %v572
    %726 = vmatpush.bf16.msra.mxu0 %v571
    %727 = vmatpush.bf16.msra.mxu0 %v570
    %728 = vmatpush.bf16.msra.mxu0 %v569
    %729 = vmatpush.bf16.msra.mxu0 %v568
    %730 = vmatpush.bf16.msra.mxu0 %v567
    %731 = vmatpush.bf16.msra.mxu0 %v566
    %732 = vmatmul.bf16.gmra.mxu0 %v252
    %v733 = vpop.f32.mrf.mxu0
    %v734 = vadd.f32 %v721, %v733
    %v735 = vpop.f32.mrf.mxu0
    %736 = vdwg.mxu0
    %737 = vmatpush.bf16.msra.mxu0 %v581
    %738 = vmatpush.bf16.msra.mxu0 %v580
    %739 = vmatpush.bf16.msra.mxu0 %v579
    %740 = vmatpush.bf16.msra.mxu0 %v578
    %741 = vmatpush.bf16.msra.mxu0 %v577
    %742 = vmatpush.bf16.msra.mxu0 %v576
    %743 = vmatpush.bf16.msra.mxu0 %v575
    %744 = vmatpush.bf16.msra.mxu0 %v574
    %745 = vmatmul.bf16.gmra.mxu0 %v253
    %v746 = vpop.f32.mrf.mxu0
    %v747 = vadd.f32 %v734, %v746
    %v748 = vpop.f32.mrf.mxu0
    %749 = vdwg.mxu0
    %v750 = vmax.f32 %v747, 0.0
    %v751 = vpack.c.bf16 %v750, %v750
    %v752 = vld [vmem:[#allocation7] sm:$0xf]
    %v753 = vld [vmem:[#allocation7 + $0x4] sm:$0xf]
    %v754 = vld [vmem:[#allocation7 + $0x8] sm:$0xf]
    %v755 = vld [vmem:[#allocation7 + $0xc] sm:$0xf]
    %v756 = vld [vmem:[#allocation7 + $0x10] sm:$0xf]
    %v757 = vld [vmem:[#allocation7 + $0x14] sm:$0xf]
    %v758 = vld [vmem:[#allocation7 + $0x18] sm:$0xf]
    %v759 = vld [vmem:[#allocation7 + $0x1c] sm:$0xf]
    %v760 = vld [vmem:[#allocation7 + $0x20] sm:$0xf]
    %v761 = vld [vmem:[#allocation7 + $0x24] sm:$0xf]
    %v762 = vld [vmem:[#allocation7 + $0x28] sm:$0xf]
    %v763 = vld [vmem:[#allocation7 + $0x2c] sm:$0xf]
    %v764 = vld [vmem:[#allocation7 + $0x30] sm:$0xf]
    %v765 = vld [vmem:[#allocation7 + $0x34] sm:$0xf]
    %v766 = vld [vmem:[#allocation7 + $0x38] sm:$0xf]
    %v767 = vld [vmem:[#allocation7 + $0x3c] sm:$0xf]
    %v768 = vperm.slane %v100, 1
    %v785 = vunpack.c.l.b16 %v752
    %v786 = vunpack.c.l.b16 %v753
    %v787 = vunpack.c.l.b16 %v754
    %v788 = vunpack.c.l.b16 %v755
    %v789 = vunpack.c.l.b16 %v756
    %v790 = vunpack.c.l.b16 %v757
    %v791 = vunpack.c.l.b16 %v758
    %v792 = vunpack.c.l.b16 %v759
    %v793 = vunpack.c.l.b16 %v760
    %v794 = vunpack.c.l.b16 %v761
    %v795 = vunpack.c.l.b16 %v762
    %v796 = vunpack.c.l.b16 %v763
    %v797 = vunpack.c.l.b16 %v764
    %v798 = vunpack.c.l.b16 %v765
    %v799 = vunpack.c.l.b16 %v766
    %v800 = vunpack.c.l.b16 %v767
    %v801 = vpack.c.b16 %v786, %v785
    %v802 = vpack.c.b16 %v788, %v787
    %v803 = vpack.c.b16 %v790, %v789
    %v804 = vpack.c.b16 %v792, %v791
    %v805 = vpack.c.b16 %v794, %v793
    %v806 = vpack.c.b16 %v796, %v795
    %v807 = vpack.c.b16 %v798, %v797
    %v808 = vpack.c.b16 %v800, %v799
    %817 = vmatpush.bf16.msra.mxu0 %v808
    %818 = vmatpush.bf16.msra.mxu0 %v807
    %819 = vmatpush.bf16.msra.mxu0 %v806
    %820 = vmatpush.bf16.msra.mxu0 %v805
    %821 = vmatpush.bf16.msra.mxu0 %v804
    %822 = vmatpush.bf16.msra.mxu0 %v803
    %823 = vmatpush.bf16.msra.mxu0 %v802
    %824 = vmatpush.bf16.msra.mxu0 %v801
    %825 = vmatmul.bf16.gmra.mxu0 %v751
    %v826 = vpop.f32.mrf.mxu0
    %v827 = vadd.f32 %v768, %v826
    %v828 = vpop.f32.mrf.mxu0
    %829 = vdwg.mxu0
    %v830 = vmax.f32 %v827, 0.0
    %v831 = vpack.c.bf16 %v830, %v830
    %v832 = vld [vmem:[#allocation8] sm:$0xf]
    %v833 = vld [vmem:[#allocation8 + $0x4] sm:$0xf]
    %v834 = vld [vmem:[#allocation8 + $0x8] sm:$0xf]
    %v835 = vld [vmem:[#allocation8 + $0xc] sm:$0xf]
    %v836 = vld [vmem:[#allocation8 + $0x10] sm:$0xf]
    %v837 = vld [vmem:[#allocation8 + $0x14] sm:$0xf]
    %v838 = vld [vmem:[#allocation8 + $0x18] sm:$0xf]
    %v839 = vld [vmem:[#allocation8 + $0x1c] sm:$0xf]
    %v840 = vld [vmem:[#allocation8 + $0x20] sm:$0xf]
    %v841 = vld [vmem:[#allocation8 + $0x24] sm:$0xf]
    %v842 = vld [vmem:[#allocation8 + $0x28] sm:$0xf]
    %v843 = vld [vmem:[#allocation8 + $0x2c] sm:$0xf]
    %v844 = vld [vmem:[#allocation8 + $0x30] sm:$0xf]
    %v845 = vld [vmem:[#allocation8 + $0x34] sm:$0xf]
    %v846 = vld [vmem:[#allocation8 + $0x38] sm:$0xf]
    %v847 = vld [vmem:[#allocation8 + $0x3c] sm:$0xf]
    %v848 = vperm.slane %v100, 2
    %v865 = vunpack.c.l.b16 %v832
    %v866 = vunpack.c.l.b16 %v833
    %v867 = vunpack.c.l.b16 %v834
    %v868 = vunpack.c.l.b16 %v835
    %v869 = vunpack.c.l.b16 %v836
    %v870 = vunpack.c.l.b16 %v837
    %v871 = vunpack.c.l.b16 %v838
    %v872 = vunpack.c.l.b16 %v839
    %v873 = vunpack.c.l.b16 %v840
    %v874 = vunpack.c.l.b16 %v841
    %v875 = vunpack.c.l.b16 %v842
    %v876 = vunpack.c.l.b16 %v843
    %v877 = vunpack.c.l.b16 %v844
    %v878 = vunpack.c.l.b16 %v845
    %v879 = vunpack.c.l.b16 %v846
    %v880 = vunpack.c.l.b16 %v847
    %v881 = vpack.c.b16 %v866, %v865
    %v882 = vpack.c.b16 %v868, %v867
    %v883 = vpack.c.b16 %v870, %v869
    %v884 = vpack.c.b16 %v872, %v871
    %v885 = vpack.c.b16 %v874, %v873
    %v886 = vpack.c.b16 %v876, %v875
    %v887 = vpack.c.b16 %v878, %v877
    %v888 = vpack.c.b16 %v880, %v879
    %897 = vmatpush.bf16.msra.mxu0 %v888
    %898 = vmatpush.bf16.msra.mxu0 %v887
    %899 = vmatpush.bf16.msra.mxu0 %v886
    %900 = vmatpush.bf16.msra.mxu0 %v885
    %901 = vmatpush.bf16.msra.mxu0 %v884
    %902 = vmatpush.bf16.msra.mxu0 %v883
    %903 = vmatpush.bf16.msra.mxu0 %v882
    %904 = vmatpush.bf16.msra.mxu0 %v881
    %905 = vmatmul.bf16.gmra.mxu0 %v831
    %v906 = vpop.f32.mrf.mxu0
    %v907 = vadd.f32 %v848, %v906
    %v908 = vpop.f32.mrf.mxu0
    %909 = vdwg.mxu0
    %v910 = vmax.f32 %v907, 0.0
    %v911 = vpack.c.bf16 %v910, %v910
    %v912 = vld [vmem:[#allocation10] sm:$0xf]
    %v913 = vld [vmem:[#allocation10 + $0x4] sm:$0xf]
    %v914 = vld [vmem:[#allocation10 + $0x8] sm:$0xf]
    %v915 = vld [vmem:[#allocation10 + $0xc] sm:$0xf]
    %v916 = vld [vmem:[#allocation10 + $0x10] sm:$0xf]
    %v917 = vld [vmem:[#allocation10 + $0x14] sm:$0xf]
    %v918 = vld [vmem:[#allocation10 + $0x18] sm:$0xf]
    %v919 = vld [vmem:[#allocation10 + $0x1c] sm:$0xf]
    %v920 = vld [vmem:[#allocation10 + $0x20] sm:$0xf]
    %v921 = vld [vmem:[#allocation10 + $0x24] sm:$0xf]
    %v922 = vld [vmem:[#allocation10 + $0x28] sm:$0xf]
    %v923 = vld [vmem:[#allocation10 + $0x2c] sm:$0xf]
    %v924 = vld [vmem:[#allocation10 + $0x30] sm:$0xf]
    %v925 = vld [vmem:[#allocation10 + $0x34] sm:$0xf]
    %v926 = vld [vmem:[#allocation10 + $0x38] sm:$0xf]
    %v927 = vld [vmem:[#allocation10 + $0x3c] sm:$0xf]
    %v928 = vperm.slane %v100, 3
    %v945 = vunpack.c.l.b16 %v912
    %v946 = vunpack.c.l.b16 %v913
    %v947 = vunpack.c.l.b16 %v914
    %v948 = vunpack.c.l.b16 %v915
    %v949 = vunpack.c.l.b16 %v916
    %v950 = vunpack.c.l.b16 %v917
    %v951 = vunpack.c.l.b16 %v918
    %v952 = vunpack.c.l.b16 %v919
    %v953 = vunpack.c.l.b16 %v920
    %v954 = vunpack.c.l.b16 %v921
    %v955 = vunpack.c.l.b16 %v922
    %v956 = vunpack.c.l.b16 %v923
    %v957 = vunpack.c.l.b16 %v924
    %v958 = vunpack.c.l.b16 %v925
    %v959 = vunpack.c.l.b16 %v926
    %v960 = vunpack.c.l.b16 %v927
    %v961 = vpack.c.b16 %v946, %v945
    %v962 = vpack.c.b16 %v948, %v947
    %v963 = vpack.c.b16 %v950, %v949
    %v964 = vpack.c.b16 %v952, %v951
    %v965 = vpack.c.b16 %v954, %v953
    %v966 = vpack.c.b16 %v956, %v955
    %v967 = vpack.c.b16 %v958, %v957
    %v968 = vpack.c.b16 %v960, %v959
    %977 = vmatpush.bf16.msra.mxu0 %v968
    %978 = vmatpush.bf16.msra.mxu0 %v967
    %979 = vmatpush.bf16.msra.mxu0 %v966
    %980 = vmatpush.bf16.msra.mxu0 %v965
    %981 = vmatpush.bf16.msra.mxu0 %v964
    %982 = vmatpush.bf16.msra.mxu0 %v963
    %983 = vmatpush.bf16.msra.mxu0 %v962
    %984 = vmatpush.bf16.msra.mxu0 %v961
    %985 = vmatmul.bf16.gmra.mxu0 %v911
    %v986 = vpop.f32.mrf.mxu0
    %v987 = vadd.f32 %v928, %v986
    %v988 = vpop.f32.mrf.mxu0
    %989 = vdwg.mxu0
    %v990 = vsub.f32 0.0, %v987
    %v991 = vmul.f32 %v990, 1.442695
    %v992 = vpow.pop %v991
    %v993 = vadd.f32 %v992, 1.0
    %v994 = vrcp.pop %v993
    %995 = vst [vmem:[#allocation11] sm:$0xff] %v994
    // Predicated region
    $region46: #{tpu_custom_call.1} parent=1 // pred_check
      _
    $region47: #{tpu_custom_call.1} parent=1 // pred_check_branch
      %997 = sbr.rel (0) target = $region49
    $region48: #{tpu_custom_call.1} parent=1 // pred_region
      %999 = vsyncadd [#allocation4], 0
      %s1001 = sshll.u32 [#allocation11], 4
      %s1002 = int_to_ptr.vmem [resolvable:$true] %s1001
      %s1003 = sshll.u32 %s6, 4
      %s1004 = int_to_ptr.hbm [resolvable:$true] %s1003
      %1006 = dma.vmem_to_hbm [thread:$0]  %s1002, 128, %s1004, [#allocation4]
    $region49: #{tpu_custom_call.1} parent=1 // pred_fallthru
      _
    // Predicated region
    $region50: #{tpu_custom_call.1} parent=1 // pred_check
      _
    $region51: #{tpu_custom_call.1} parent=1 // pred_check_branch
      %1008 = sbr.rel (0) target = $region53
    $region52: #{tpu_custom_call.1} parent=1 // pred_region
      %1010 = dma.done [#allocation4], 128
    $region53: #{tpu_custom_call.1} parent=1 // pred_fallthru
      _
    %1011 = vsyncpa [#allocation3], 1
    %1012 = vsyncpa [#allocation6], 1
    %1013 = vsyncpa [#allocation9], 1
    %1014 = vsyncpa [#allocation4], 1

</llo_original>
